<compile_context>
chip_gen: v6e
topology: v6e:2x2x1
jax: 0.10.0
libtpu: 0.0.40
codegen_flags: <defaults>
</compile_context>

<pallas_src>
import functools

import jax
import jax.numpy as jnp
from jax.experimental import pallas as pl
from jax.experimental.pallas import tpu as pltpu

_LANES = 128
_MAX_ROW_TILE = 8192


def _vmem_budgets():
    """Generation-aware (block_budget_bytes, vmem_limit_bytes)."""
    cap = None
    try:
        cap = getattr(pltpu.get_tpu_info(), "vmem_capacity_bytes", None)
    except Exception:
        cap = None
    if cap is not None and cap >= 128 * 1024 * 1024:
        # v5e / v6e: 128 MiB VMEM per TensorCore -> use it.
        return 64 * 1024 * 1024, 100 * 1024 * 1024
    # v7x (64 MiB per TC) or unknown: conservative sizing that fits everywhere.
    return 32 * 1024 * 1024, 48 * 1024 * 1024


def _pick_row_tile(rows, lanes, itemsize, block_budget):
    """Largest sublane-aligned row tile that fits the VMEM block budget."""
    sub = {4: 8, 2: 16, 1: 32}.get(itemsize, 8)
    # Double-buffered input block + double-buffered output block.  The in-kernel
    # f32 working set only costs extra VMEM when the I/O dtype is narrower
    # than f32 (for f32 the "upcast" is a no-op).
    per_row = lanes * 4 * itemsize
    if itemsize < 4:
        per_row += lanes * 8
    tile = block_budget // max(per_row, 1)
    tile = min(tile, _MAX_ROW_TILE)
    tile = max((tile // sub) * sub, sub)
    if tile >= rows:
        # One block covering all rows ("equals full dim" satisfies tiling rules
        # even when rows is not a multiple of the sublane count).
        return rows
    return tile


def _ln_v2_kernel(x_ref, alpha_ref, beta_ref, o_ref, *, epsilon, inv_d):
    """Plain path: one logical row per lane row.  x_ref: (R, D), a/b: (1, D)."""
    x = x_ref[...].astype(jnp.float32)
    mean = jnp.sum(x, axis=-1, keepdims=True) * inv_d
    xc = x - mean
    # Two-pass variance (numerically robust for large-mean inputs).
    var = jnp.sum(xc * xc, axis=-1, keepdims=True) * inv_d
    inv_std = jax.lax.rsqrt(var + epsilon)
    alpha = alpha_ref[...].astype(jnp.float32)
    beta = beta_ref[...].astype(jnp.float32)
    o_ref[...] = (xc * inv_std * alpha + beta).astype(o_ref.dtype)


def _ln_v2_packed_kernel(x_ref, alpha_ref, beta_ref, seg_ref, segt_ref, o_ref,
                         *, epsilon, inv_d):
    """Packed path: k = 128//D logical rows per 128-lane row.

    x_ref: (R, 128); alpha/beta: (1, 128) (tiled k times);
    seg: (128, k) one-hot segment matrix, segt = seg.T: (k, 128).
    Segmented lane reductions + broadcast-back are done with two tiny MXU
    matmuls so the data stays lane-dense (no in-kernel relayout).
    """
    x = x_ref[...].astype(jnp.float32)
    seg = seg_ref[...]
    segt = segt_ref[...]
    sums = jnp.dot(x, seg, preferred_element_type=jnp.float32)            # (R, k)
    mean_b = jnp.dot(sums * inv_d, segt, preferred_element_type=jnp.float32)  # (R, 128)
    xc = x - mean_b
    sq = jnp.dot(xc * xc, seg, preferred_element_type=jnp.float32)        # (R, k)
    var_b = jnp.dot(sq * inv_d, segt, preferred_element_type=jnp.float32)
    inv_std = jax.lax.rsqrt(var_b + epsilon)
    alpha = alpha_ref[...].astype(jnp.float32)
    beta = beta_ref[...].astype(jnp.float32)
    o_ref[...] = (xc * inv_std * alpha + beta).astype(o_ref.dtype)


def ln_v2(x, alpha, beta, *, epsilon=1e-5, row_tile=None):
    """LN_v2 forward. x: (B, T, D); alpha, beta: (1, 1, D)."""
    B, T, D = x.shape
    rows = B * T
    itemsize = jnp.dtype(x.dtype).itemsize
    block_budget, vmem_limit = _vmem_budgets()

    x2 = x.reshape(rows, D)
    a2 = alpha.reshape(1, D)
    b2 = beta.reshape(1, D)

    compiler_params = pltpu.CompilerParams(
        dimension_semantics=("parallel",),
        vmem_limit_bytes=vmem_limit,
    )

    use_packed = (D < _LANES) and (_LANES % D == 0)

    if use_packed:
        # Pack k rows per 128-lane row so stores/loads are lane-dense.
        k = _LANES // D
        pad = (-rows) % k
        if pad:
            # Padded rows compute LN of zeros (finite) and are sliced off below.
            x2 = jnp.pad(x2, ((0, pad), (0, 0)))
        rows_p = (rows + pad) // k
        xp = x2.reshape(rows_p, _LANES)
        a_t = jnp.tile(a2, (1, k))
        b_t = jnp.tile(b2, (1, k))
        lane = jnp.arange(_LANES)
        seg = (lane[:, None] // D == jnp.arange(k)[None, :]).astype(jnp.float32)
        segt = seg.T

        if row_tile is None:
            row_tile = _pick_row_tile(rows_p, _LANES, itemsize, block_budget)
        kernel = functools.partial(_ln_v2_packed_kernel,
                                   epsilon=epsilon, inv_d=1.0 / D)
        grid = (pl.cdiv(rows_p, row_tile),)
        outp = pl.pallas_call(
            kernel,
            out_shape=jax.ShapeDtypeStruct((rows_p, _LANES), x.dtype),
            grid_spec=pltpu.PrefetchScalarGridSpec(
                num_scalar_prefetch=0,
                grid=grid,
                in_specs=[
                    pl.BlockSpec((row_tile, _LANES), lambda i: (i, 0)),
                    pl.BlockSpec((1, _LANES), lambda i: (0, 0)),
                    pl.BlockSpec((1, _LANES), lambda i: (0, 0)),
                    pl.BlockSpec((_LANES, k), lambda i: (0, 0)),
                    pl.BlockSpec((k, _LANES), lambda i: (0, 0)),
                ],
                out_specs=pl.BlockSpec((row_tile, _LANES), lambda i: (i, 0)),
            ),
            compiler_params=compiler_params,
        )(xp, a_t, b_t, seg, segt)
        out2 = outp.reshape(rows + pad, D)[:rows]
        return out2.reshape(B, T, D)

    # Plain path: D stays the last (lane) dim; fully lane-dense when D % 128 == 0.
    # TODO(synk): D that is neither a multiple nor a divisor of 128 falls back to
    # masked partial stores; a pad-to-128-and-mask variant could be added.
    if row_tile is None:
        row_tile = _pick_row_tile(rows, D, itemsize, block_budget)
    kernel = functools.partial(_ln_v2_kernel, epsilon=epsilon, inv_d=1.0 / D)
    grid = (pl.cdiv(rows, row_tile),)  # partial tail block is masked on store
    out2 = pl.pallas_call(
        kernel,
        out_shape=jax.ShapeDtypeStruct((rows, D), x.dtype),
        grid_spec=pltpu.PrefetchScalarGridSpec(
            num_scalar_prefetch=0,
            grid=grid,
            in_specs=[
                pl.BlockSpec((row_tile, D), lambda i: (i, 0)),
                pl.BlockSpec((1, D), lambda i: (0, 0)),
                pl.BlockSpec((1, D), lambda i: (0, 0)),
            ],
            out_specs=pl.BlockSpec((row_tile, D), lambda i: (i, 0)),
        ),
        compiler_params=compiler_params,
    )(x2, a2, b2)
    return out2.reshape(B, T, D)


def _reference_ln_v2(x, alpha, beta, epsilon=1e-5):
    mean = jnp.mean(x, axis=-1, keepdims=True)
    var = jnp.mean((x - mean) ** 2, axis=-1, keepdims=True)
    std = jnp.sqrt(var + epsilon)
    return (x - mean) / std * alpha + beta


if __name__ == "__main__":
    key = jax.random.PRNGKey(0)
    kx, ka, kb, kx3, kx4 = jax.random.split(key, 5)

    # Case 1: module demo shape (batch=2, seq=8, dim=32), default params
    # (alpha=ones, beta=zeros).  D=32 exercises the lane-dense packed path.
    B, T, D = 2, 8, 32
    x = jax.random.normal(kx, (B, T, D), dtype=jnp.float32)
    alpha = jnp.ones((1, 1, D), dtype=jnp.float32)
    beta = jnp.zeros((1, 1, D), dtype=jnp.float32)
    y = jax.block_until_ready(ln_v2(x, alpha, beta, epsilon=1e-5))
    y_ref = _reference_ln_v2(x, alpha, beta, epsilon=1e-5)
    assert y.shape == (B, T, D)
    assert jnp.allclose(y, y_ref, atol=1e-5, rtol=1e-5), "mismatch (default params)"

    # Case 2: random scale/shift + large mean offset (two-pass variance check).
    alpha2 = jax.random.normal(ka, (1, 1, D), dtype=jnp.float32)
    beta2 = jax.random.normal(kb, (1, 1, D), dtype=jnp.float32)
    x_off = x + 100.0
    y2 = jax.block_until_ready(ln_v2(x_off, alpha2, beta2, epsilon=1e-5))
    y2_ref = _reference_ln_v2(x_off, alpha2, beta2, epsilon=1e-5)
    assert jnp.allclose(y2, y2_ref, atol=1e-3, rtol=1e-3), "mismatch (offset/random params)"

    # Case 3: rows not a multiple of the packing factor (pad + slice path).
    x3 = jax.random.normal(kx3, (1, 5, D), dtype=jnp.float32)
    y3 = jax.block_until_ready(ln_v2(x3, alpha, beta, epsilon=1e-5))
    y3_ref = _reference_ln_v2(x3, alpha, beta, epsilon=1e-5)
    assert jnp.allclose(y3, y3_ref, atol=1e-5, rtol=1e-5), "mismatch (padded rows)"

    # Case 4: D multiple of 128 exercises the plain lane-dense path.
    D4 = 128
    x4 = jax.random.normal(kx4, (2, 8, D4), dtype=jnp.float32)
    a4 = jnp.ones((1, 1, D4), dtype=jnp.float32)
    b4 = jnp.zeros((1, 1, D4), dtype=jnp.float32)
    y4 = jax.block_until_ready(ln_v2(x4, a4, b4, epsilon=1e-5))
    y4_ref = _reference_ln_v2(x4, a4, b4, epsilon=1e-5)
    assert jnp.allclose(y4, y4_ref, atol=1e-5, rtol=1e-5), "mismatch (D=128 path)"

    print("KERNEL_OK")
</pallas_src>

<mosaic_0001>
module attributes {stable_mosaic.version = 11 : i64} {
  func.func @_ln_v2_packed_kernel(%arg0: i32, %arg1: memref<4x128xf32, #tpu.memory_space<vmem>>, %arg2: memref<1x128xf32, #tpu.memory_space<vmem>>, %arg3: memref<1x128xf32, #tpu.memory_space<vmem>>, %arg4: memref<128x4xf32, #tpu.memory_space<vmem>>, %arg5: memref<4x128xf32, #tpu.memory_space<vmem>>, %arg6: memref<4x128xf32, #tpu.memory_space<vmem>>) attributes {dimension_semantics = [#tpu.dimension_semantics<parallel>], iteration_bounds = array<i64: 1>, scalar_prefetch = 0 : i64, scratch_operands = 0 : i64, tpu.core_type = #tpu.core_type<tc>, window_params = [{transform_indices = @transform_0, window_bounds = array<i64: 4, 128>}, {pipeline_mode = #tpu.pipeline_mode<synchronous>, transform_indices = @transform_1, window_bounds = array<i64: 1, 128>}, {pipeline_mode = #tpu.pipeline_mode<synchronous>, transform_indices = @transform_2, window_bounds = array<i64: 1, 128>}, {pipeline_mode = #tpu.pipeline_mode<synchronous>, transform_indices = @transform_3, window_bounds = array<i64: 128, 4>}, {pipeline_mode = #tpu.pipeline_mode<synchronous>, transform_indices = @transform_4, window_bounds = array<i64: 4, 128>}, {transform_indices = @transform_5, window_bounds = array<i64: 4, 128>}]} {
    %c0 = arith.constant 0 : index
    %c0_0 = arith.constant 0 : index
    %0 = vector.load %arg1[%c0, %c0_0] : memref<4x128xf32, #tpu.memory_space<vmem>>, vector<4x128xf32>
    %c0_1 = arith.constant 0 : index
    %c0_2 = arith.constant 0 : index
    %1 = vector.load %arg4[%c0_1, %c0_2] : memref<128x4xf32, #tpu.memory_space<vmem>>, vector<128x4xf32>
    %c0_3 = arith.constant 0 : index
    %c0_4 = arith.constant 0 : index
    %2 = vector.load %arg5[%c0_3, %c0_4] : memref<4x128xf32, #tpu.memory_space<vmem>>, vector<4x128xf32>
    %cst = arith.constant dense<0.000000e+00> : vector<4x4xf32>
    %3 = tpu.matmul %0, %1, %cst {dimension_numbers = #tpu.dot_dimension_numbers<[1], [0], [0], [1], [0, 0, 1, 1], [], []>} : vector<4x128xf32>, vector<128x4xf32>, vector<4x4xf32> -> vector<4x4xf32>
    %cst_5 = arith.constant 3.125000e-02 : f32
    %4 = vector.broadcast %cst_5 : f32 to vector<4x4xf32>
    %5 = arith.mulf %3, %4 : vector<4x4xf32>
    %cst_6 = arith.constant dense<0.000000e+00> : vector<4x128xf32>
    %6 = tpu.matmul %5, %2, %cst_6 {dimension_numbers = #tpu.dot_dimension_numbers<[1], [0], [0], [1], [0, 0, 1, 1], [], []>} : vector<4x4xf32>, vector<4x128xf32>, vector<4x128xf32> -> vector<4x128xf32>
    %7 = arith.subf %0, %6 : vector<4x128xf32>
    %8 = arith.mulf %7, %7 : vector<4x128xf32>
    %cst_7 = arith.constant dense<0.000000e+00> : vector<4x4xf32>
    %9 = tpu.matmul %8, %1, %cst_7 {dimension_numbers = #tpu.dot_dimension_numbers<[1], [0], [0], [1], [0, 0, 1, 1], [], []>} : vector<4x128xf32>, vector<128x4xf32>, vector<4x4xf32> -> vector<4x4xf32>
    %cst_8 = arith.constant 3.125000e-02 : f32
    %10 = vector.broadcast %cst_8 : f32 to vector<4x4xf32>
    %11 = arith.mulf %9, %10 : vector<4x4xf32>
    %cst_9 = arith.constant dense<0.000000e+00> : vector<4x128xf32>
    %12 = tpu.matmul %11, %2, %cst_9 {dimension_numbers = #tpu.dot_dimension_numbers<[1], [0], [0], [1], [0, 0, 1, 1], [], []>} : vector<4x4xf32>, vector<4x128xf32>, vector<4x128xf32> -> vector<4x128xf32>
    %cst_10 = arith.constant 9.99999974E-6 : f32
    %13 = vector.broadcast %cst_10 : f32 to vector<4x128xf32>
    %14 = arith.addf %12, %13 : vector<4x128xf32>
    %15 = math.rsqrt %14 : vector<4x128xf32>
    %c0_11 = arith.constant 0 : index
    %c0_12 = arith.constant 0 : index
    %16 = vector.load %arg2[%c0_11, %c0_12] : memref<1x128xf32, #tpu.memory_space<vmem>>, vector<1x128xf32>
    %c0_13 = arith.constant 0 : index
    %c0_14 = arith.constant 0 : index
    %17 = vector.load %arg3[%c0_13, %c0_14] : memref<1x128xf32, #tpu.memory_space<vmem>>, vector<1x128xf32>
    %18 = arith.mulf %7, %15 : vector<4x128xf32>
    %19 = vector.broadcast %16 : vector<1x128xf32> to vector<4x128xf32>
    %20 = arith.mulf %18, %19 : vector<4x128xf32>
    %21 = vector.broadcast %17 : vector<1x128xf32> to vector<4x128xf32>
    %22 = arith.addf %20, %21 : vector<4x128xf32>
    %c0_15 = arith.constant 0 : index
    %c0_16 = arith.constant 0 : index
    %23 = vector.load %arg6[%c0_15, %c0_16] : memref<4x128xf32, #tpu.memory_space<vmem>>, vector<4x128xf32>
    tpu.vector_store %arg6[%c0_15, %c0_16], %22 {strides = array<i32>} : memref<4x128xf32, #tpu.memory_space<vmem>>, vector<4x128xf32>,
    return
  }
  func.func @transform_0(%arg0: i32) -> (i32, i32) {
    %c0_i32 = arith.constant 0 : i32
    %c0_i32_0 = arith.constant 0 : i32
    return %arg0, %c0_i32 : i32, i32
  }
  func.func @transform_1(%arg0: i32) -> (i32, i32) {
    %c0_i32 = arith.constant 0 : i32
    %c0_i32_0 = arith.constant 0 : i32
    %c0_i32_1 = arith.constant 0 : i32
    return %c0_i32, %c0_i32_0 : i32, i32
  }
  func.func @transform_2(%arg0: i32) -> (i32, i32) {
    %c0_i32 = arith.constant 0 : i32
    %c0_i32_0 = arith.constant 0 : i32
    %c0_i32_1 = arith.constant 0 : i32
    return %c0_i32, %c0_i32_0 : i32, i32
  }
  func.func @transform_3(%arg0: i32) -> (i32, i32) {
    %c0_i32 = arith.constant 0 : i32
    %c0_i32_0 = arith.constant 0 : i32
    %c0_i32_1 = arith.constant 0 : i32
    return %c0_i32, %c0_i32_0 : i32, i32
  }
  func.func @transform_4(%arg0: i32) -> (i32, i32) {
    %c0_i32 = arith.constant 0 : i32
    %c0_i32_0 = arith.constant 0 : i32
    %c0_i32_1 = arith.constant 0 : i32
    return %c0_i32, %c0_i32_0 : i32, i32
  }
  func.func @transform_5(%arg0: i32) -> (i32, i32) {
    %c0_i32 = arith.constant 0 : i32
    %c0_i32_0 = arith.constant 0 : i32
    return %arg0, %c0_i32 : i32, i32
  }
}

</mosaic_0001>

<llo_original>
// kernel: tpu_custom_call.1
$region0: #{tpu_custom_call.1}
  #allocation0 [shape = 'u32[]', space=smem, size = 0x4, offset = 0x4, fixed_abs, tag = 'smem constant byte address 0x4 - core index']
  #allocation1 [shape = 'u32[144,128]{1,0:T(1,128)}', space=vmem, size = 0x12000, scoped, tag = 'internal scratch']
  %s0 = inlined_call_operand.vmem [shape: f32[4,128], index: 0, kind: input, shape index: {}]
  %s1 = inlined_call_operand.vmem [shape: f32[1,128], index: 1, kind: input, shape index: {}]
  %s2 = inlined_call_operand.vmem [shape: f32[1,128], index: 2, kind: input, shape index: {}]
  %s3 = inlined_call_operand.vmem [shape: f32[128,4], index: 3, kind: input, shape index: {}]
  %s4 = inlined_call_operand.vmem [shape: f32[4,128], index: 4, kind: input, shape index: {}]
  %s5 = inlined_call_operand.hbm [shape: f32[4,128], index: 5, kind: output, shape index: {}]
  %s6 = sld [smem:[#allocation0]]
  $region30: #{tpu_custom_call.1} parent=0
    _
  %s8 = ssub.s32 1, %s6
  %s9 = scalar_select 0, %s8, %s6
  $region1: #{tpu_custom_call.1} parent=0
    #allocation2 [shape = 'u8[2048]{0}', space=vmem, size = 0x800, scoped, tag = 'output window, operand 0, single buffered']
    #allocation3 [shape = 's32[1]{0}', space=sflag, size = 0x4, scoped, tag = 'scoped memory for tpu_custom_call.1']
    %10 = vsyncpa [#allocation3], 0
    // Predicated region
    $region2: #{tpu_custom_call.1} parent=1 // pred_check
      _
    $region3: #{tpu_custom_call.1} parent=1 // pred_check_branch
      %12 = sbr.rel (0) target = $region5
    $region4: #{tpu_custom_call.1} parent=1 // pred_region
      _
    $region5: #{tpu_custom_call.1} parent=1 // pred_fallthru
      _
    // Predicated region
    $region6: #{tpu_custom_call.1} parent=1 // pred_check
      _
    $region7: #{tpu_custom_call.1} parent=1 // pred_check_branch
      %14 = sbr.rel (0) target = $region9
    $region8: #{tpu_custom_call.1} parent=1 // pred_region
      _
    $region9: #{tpu_custom_call.1} parent=1 // pred_fallthru
      _
    // Predicated region
    $region10: #{tpu_custom_call.1} parent=1 // pred_check
      _
    $region11: #{tpu_custom_call.1} parent=1 // pred_check_branch
      %16 = sbr.rel (0) target = $region13
    $region12: #{tpu_custom_call.1} parent=1 // pred_region
      _
    $region13: #{tpu_custom_call.1} parent=1 // pred_fallthru
      _
    // Predicated region
    $region14: #{tpu_custom_call.1} parent=1 // pred_check
      _
    $region15: #{tpu_custom_call.1} parent=1 // pred_check_branch
      %18 = sbr.rel (0) target = $region17
    $region16: #{tpu_custom_call.1} parent=1 // pred_region
      _
    $region17: #{tpu_custom_call.1} parent=1 // pred_fallthru
      _
    // Predicated region
    $region18: #{tpu_custom_call.1} parent=1 // pred_check
      _
    $region19: #{tpu_custom_call.1} parent=1 // pred_check_branch
      %20 = sbr.rel (0) target = $region21
    $region20: #{tpu_custom_call.1} parent=1 // pred_region
      _
    $region21: #{tpu_custom_call.1} parent=1 // pred_fallthru
      _
    %v21 = vld [vmem:[%s0] sm:$0xf]
    %v22 = vld [vmem:[%s3] sm:$0xff]
    %v23 = vld [vmem:[%s3 + $0x8] sm:$0xff]
    %v24 = vld [vmem:[%s3 + $0x10] sm:$0xff]
    %v25 = vld [vmem:[%s3 + $0x18] sm:$0xff]
    %v26 = vld [vmem:[%s3 + $0x20] sm:$0xff]
    %v27 = vld [vmem:[%s3 + $0x28] sm:$0xff]
    %v28 = vld [vmem:[%s3 + $0x30] sm:$0xff]
    %v29 = vld [vmem:[%s3 + $0x38] sm:$0xff]
    %v30 = vld [vmem:[%s3 + $0x40] sm:$0xff]
    %v31 = vld [vmem:[%s3 + $0x48] sm:$0xff]
    %v32 = vld [vmem:[%s3 + $0x50] sm:$0xff]
    %v33 = vld [vmem:[%s3 + $0x58] sm:$0xff]
    %v34 = vld [vmem:[%s3 + $0x60] sm:$0xff]
    %v35 = vld [vmem:[%s3 + $0x68] sm:$0xff]
    %v36 = vld [vmem:[%s3 + $0x70] sm:$0xff]
    %v37 = vld [vmem:[%s3 + $0x78] sm:$0xff]
    %v38 = vld [vmem:[%s4] sm:$0xf]
    %39 = vmatprep.subr.mxu0 0.0
    %40 = vmatpush1.msra.mxu0 %v37
    %41 = vmatprep.subr.mxu0 0.0
    %42 = vmatpush1.msra.mxu0 %v36
    %43 = vmatprep.subr.mxu0 0.0
    %44 = vmatpush1.msra.mxu0 %v35
    %45 = vmatprep.subr.mxu0 0.0
    %46 = vmatpush1.msra.mxu0 %v34
    %47 = vmatprep.subr.mxu0 0.0
    %48 = vmatpush1.msra.mxu0 %v33
    %49 = vmatprep.subr.mxu0 0.0
    %50 = vmatpush1.msra.mxu0 %v32
    %51 = vmatprep.subr.mxu0 0.0
    %52 = vmatpush1.msra.mxu0 %v31
    %53 = vmatprep.subr.mxu0 0.0
    %54 = vmatpush1.msra.mxu0 %v30
    %55 = vmatprep.subr.mxu0 0.0
    %56 = vmatpush1.msra.mxu0 %v29
    %57 = vmatprep.subr.mxu0 0.0
    %58 = vmatpush1.msra.mxu0 %v28
    %59 = vmatprep.subr.mxu0 0.0
    %60 = vmatpush1.msra.mxu0 %v27
    %61 = vmatprep.subr.mxu0 0.0
    %62 = vmatpush1.msra.mxu0 %v26
    %63 = vmatprep.subr.mxu0 0.0
    %64 = vmatpush1.msra.mxu0 %v25
    %65 = vmatprep.subr.mxu0 0.0
    %66 = vmatpush1.msra.mxu0 %v24
    %67 = vmatprep.subr.mxu0 0.0
    %68 = vmatpush1.msra.mxu0 %v23
    %69 = vmatprep.subr.mxu0 0.0
    %70 = vmatpush1.msra.mxu0 %v22
    %71 = vmatprep.subr.mxu0 0.0
    %72 = vmatpush2.msra.mxu0 0.0
    %73 = vmatprep.subr.mxu0 0.0
    %74 = vmatpush2.msra.mxu0 0.0
    %75 = vmatprep.subr.mxu0 0.0
    %76 = vmatpush2.msra.mxu0 0.0
    %77 = vmatprep.subr.mxu0 0.0
    %78 = vmatpush2.msra.mxu0 0.0
    %79 = vmatprep.subr.mxu0 0.0
    %80 = vmatpush2.msra.mxu0 0.0
    %81 = vmatprep.subr.mxu0 0.0
    %82 = vmatpush2.msra.mxu0 0.0
    %83 = vmatprep.subr.mxu0 0.0
    %84 = vmatpush2.msra.mxu0 0.0
    %85 = vmatprep.subr.mxu0 0.0
    %86 = vmatpush2.msra.mxu0 0.0
    %87 = vmatprep.subr.mxu0 0.0
    %88 = vmatpush2.msra.mxu0 0.0
    %89 = vmatprep.subr.mxu0 0.0
    %90 = vmatpush2.msra.mxu0 0.0
    %91 = vmatprep.subr.mxu0 0.0
    %92 = vmatpush2.msra.mxu0 0.0
    %93 = vmatprep.subr.mxu0 0.0
    %94 = vmatpush2.msra.mxu0 0.0
    %95 = vmatprep.subr.mxu0 0.0
    %96 = vmatpush2.msra.mxu0 0.0
    %97 = vmatprep.subr.mxu0 0.0
    %98 = vmatpush2.msra.mxu0 0.0
    %99 = vmatprep.subr.mxu0 0.0
    %100 = vmatpush2.msra.mxu0 0.0
    %101 = vmatprep.subr.mxu0 0.0
    %102 = vmatpush2.msra.mxu0 0.0
    %103 = vmatprep.mubr.f32.mxu0 0.0
    %104 = vmatmul.mubr.f32.gmra.mxu0 %v21
    %v105 = vpop.f32.mrf.mxu0
    %v106 = vadd.f32 0.0, %v105
    %v107 = vpop.f32.mrf.mxu0
    %108 = vdwg.mxu0
    %v109 = vmul.f32 %v106, 0.03125
    %vm110 = vcmask 31744
    %v112 = vsel %vm110, %v109, 0
    %vm114 = vcmask 1043456
    %v116 = vsel %vm114, %v38, 0
    %118 = vmatprep.subr.mxu0 0.0
    %119 = vmatpush1.msra.mxu0 0.0
    %120 = vmatprep.subr.mxu0 0.0
    %121 = vmatpush1.msra.mxu0 0.0
    %122 = vmatprep.subr.mxu0 0.0
    %123 = vmatpush1.msra.mxu0 0.0
    %124 = vmatprep.subr.mxu0 0.0
    %125 = vmatpush1.msra.mxu0 0.0
    %126 = vmatprep.subr.mxu0 0.0
    %127 = vmatpush1.msra.mxu0 0.0
    %128 = vmatprep.subr.mxu0 0.0
    %129 = vmatpush1.msra.mxu0 0.0
    %130 = vmatprep.subr.mxu0 0.0
    %131 = vmatpush1.msra.mxu0 0.0
    %132 = vmatprep.subr.mxu0 0.0
    %133 = vmatpush1.msra.mxu0 0.0
    %134 = vmatprep.subr.mxu0 0.0
    %135 = vmatpush1.msra.mxu0 0.0
    %136 = vmatprep.subr.mxu0 0.0
    %137 = vmatpush1.msra.mxu0 0.0
    %138 = vmatprep.subr.mxu0 0.0
    %139 = vmatpush1.msra.mxu0 0.0
    %140 = vmatprep.subr.mxu0 0.0
    %141 = vmatpush1.msra.mxu0 0.0
    %142 = vmatprep.subr.mxu0 0.0
    %143 = vmatpush1.msra.mxu0 0.0
    %144 = vmatprep.subr.mxu0 0.0
    %145 = vmatpush1.msra.mxu0 0.0
    %146 = vmatprep.subr.mxu0 0.0
    %147 = vmatpush1.msra.mxu0 0.0
    %148 = vmatprep.subr.mxu0 0.0
    %149 = vmatpush1.msra.mxu0 %v116
    %150 = vmatprep.subr.mxu0 0.0
    %151 = vmatpush2.msra.mxu0 0.0
    %152 = vmatprep.subr.mxu0 0.0
    %153 = vmatpush2.msra.mxu0 0.0
    %154 = vmatprep.subr.mxu0 0.0
    %155 = vmatpush2.msra.mxu0 0.0
    %156 = vmatprep.subr.mxu0 0.0
    %157 = vmatpush2.msra.mxu0 0.0
    %158 = vmatprep.subr.mxu0 0.0
    %159 = vmatpush2.msra.mxu0 0.0
    %160 = vmatprep.subr.mxu0 0.0
    %161 = vmatpush2.msra.mxu0 0.0
    %162 = vmatprep.subr.mxu0 0.0
    %163 = vmatpush2.msra.mxu0 0.0
    %164 = vmatprep.subr.mxu0 0.0
    %165 = vmatpush2.msra.mxu0 0.0
    %166 = vmatprep.subr.mxu0 0.0
    %167 = vmatpush2.msra.mxu0 0.0
    %168 = vmatprep.subr.mxu0 0.0
    %169 = vmatpush2.msra.mxu0 0.0
    %170 = vmatprep.subr.mxu0 0.0
    %171 = vmatpush2.msra.mxu0 0.0
    %172 = vmatprep.subr.mxu0 0.0
    %173 = vmatpush2.msra.mxu0 0.0
    %174 = vmatprep.subr.mxu0 0.0
    %175 = vmatpush2.msra.mxu0 0.0
    %176 = vmatprep.subr.mxu0 0.0
    %177 = vmatpush2.msra.mxu0 0.0
    %178 = vmatprep.subr.mxu0 0.0
    %179 = vmatpush2.msra.mxu0 0.0
    %180 = vmatprep.subr.mxu0 0.0
    %181 = vmatpush2.msra.mxu0 0.0
    %182 = vmatprep.mubr.f32.mxu0 0.0
    %183 = vmatmul.mubr.f32.gmra.mxu0 %v112
    %v184 = vpop.f32.mrf.mxu0
    %v185 = vadd.f32 0.0, %v184
    %v186 = vpop.f32.mrf.mxu0
    %187 = vdwg.mxu0
    %v188 = vsub.f32 %v21, %v185
    %v189 = vmul.f32 %v188, %v188
    %190 = vmatprep.subr.mxu0 0.0
    %191 = vmatpush1.msra.mxu0 %v37
    %192 = vmatprep.subr.mxu0 0.0
    %193 = vmatpush1.msra.mxu0 %v36
    %194 = vmatprep.subr.mxu0 0.0
    %195 = vmatpush1.msra.mxu0 %v35
    %196 = vmatprep.subr.mxu0 0.0
    %197 = vmatpush1.msra.mxu0 %v34
    %198 = vmatprep.subr.mxu0 0.0
    %199 = vmatpush1.msra.mxu0 %v33
    %200 = vmatprep.subr.mxu0 0.0
    %201 = vmatpush1.msra.mxu0 %v32
    %202 = vmatprep.subr.mxu0 0.0
    %203 = vmatpush1.msra.mxu0 %v31
    %204 = vmatprep.subr.mxu0 0.0
    %205 = vmatpush1.msra.mxu0 %v30
    %206 = vmatprep.subr.mxu0 0.0
    %207 = vmatpush1.msra.mxu0 %v29
    %208 = vmatprep.subr.mxu0 0.0
    %209 = vmatpush1.msra.mxu0 %v28
    %210 = vmatprep.subr.mxu0 0.0
    %211 = vmatpush1.msra.mxu0 %v27
    %212 = vmatprep.subr.mxu0 0.0
    %213 = vmatpush1.msra.mxu0 %v26
    %214 = vmatprep.subr.mxu0 0.0
    %215 = vmatpush1.msra.mxu0 %v25
    %216 = vmatprep.subr.mxu0 0.0
    %217 = vmatpush1.msra.mxu0 %v24
    %218 = vmatprep.subr.mxu0 0.0
    %219 = vmatpush1.msra.mxu0 %v23
    %220 = vmatprep.subr.mxu0 0.0
    %221 = vmatpush1.msra.mxu0 %v22
    %222 = vmatprep.subr.mxu0 0.0
    %223 = vmatpush2.msra.mxu0 0.0
    %224 = vmatprep.subr.mxu0 0.0
    %225 = vmatpush2.msra.mxu0 0.0
    %226 = vmatprep.subr.mxu0 0.0
    %227 = vmatpush2.msra.mxu0 0.0
    %228 = vmatprep.subr.mxu0 0.0
    %229 = vmatpush2.msra.mxu0 0.0
    %230 = vmatprep.subr.mxu0 0.0
    %231 = vmatpush2.msra.mxu0 0.0
    %232 = vmatprep.subr.mxu0 0.0
    %233 = vmatpush2.msra.mxu0 0.0
    %234 = vmatprep.subr.mxu0 0.0
    %235 = vmatpush2.msra.mxu0 0.0
    %236 = vmatprep.subr.mxu0 0.0
    %237 = vmatpush2.msra.mxu0 0.0
    %238 = vmatprep.subr.mxu0 0.0
    %239 = vmatpush2.msra.mxu0 0.0
    %240 = vmatprep.subr.mxu0 0.0
    %241 = vmatpush2.msra.mxu0 0.0
    %242 = vmatprep.subr.mxu0 0.0
    %243 = vmatpush2.msra.mxu0 0.0
    %244 = vmatprep.subr.mxu0 0.0
    %245 = vmatpush2.msra.mxu0 0.0
    %246 = vmatprep.subr.mxu0 0.0
    %247 = vmatpush2.msra.mxu0 0.0
    %248 = vmatprep.subr.mxu0 0.0
    %249 = vmatpush2.msra.mxu0 0.0
    %250 = vmatprep.subr.mxu0 0.0
    %251 = vmatpush2.msra.mxu0 0.0
    %252 = vmatprep.subr.mxu0 0.0
    %253 = vmatpush2.msra.mxu0 0.0
    %254 = vmatprep.mubr.f32.mxu0 0.0
    %255 = vmatmul.mubr.f32.gmra.mxu0 %v189
    %v256 = vpop.f32.mrf.mxu0
    %v257 = vadd.f32 0.0, %v256
    %v258 = vpop.f32.mrf.mxu0
    %259 = vdwg.mxu0
    %v260 = vmul.f32 %v257, 0.03125
    %v262 = vsel %vm110, %v260, 0
    %264 = vmatprep.subr.mxu0 0.0
    %265 = vmatpush1.msra.mxu0 0.0
    %266 = vmatprep.subr.mxu0 0.0
    %267 = vmatpush1.msra.mxu0 0.0
    %268 = vmatprep.subr.mxu0 0.0
    %269 = vmatpush1.msra.mxu0 0.0
    %270 = vmatprep.subr.mxu0 0.0
    %271 = vmatpush1.msra.mxu0 0.0
    %272 = vmatprep.subr.mxu0 0.0
    %273 = vmatpush1.msra.mxu0 0.0
    %274 = vmatprep.subr.mxu0 0.0
    %275 = vmatpush1.msra.mxu0 0.0
    %276 = vmatprep.subr.mxu0 0.0
    %277 = vmatpush1.msra.mxu0 0.0
    %278 = vmatprep.subr.mxu0 0.0
    %279 = vmatpush1.msra.mxu0 0.0
    %280 = vmatprep.subr.mxu0 0.0
    %281 = vmatpush1.msra.mxu0 0.0
    %282 = vmatprep.subr.mxu0 0.0
    %283 = vmatpush1.msra.mxu0 0.0
    %284 = vmatprep.subr.mxu0 0.0
    %285 = vmatpush1.msra.mxu0 0.0
    %286 = vmatprep.subr.mxu0 0.0
    %287 = vmatpush1.msra.mxu0 0.0
    %288 = vmatprep.subr.mxu0 0.0
    %289 = vmatpush1.msra.mxu0 0.0
    %290 = vmatprep.subr.mxu0 0.0
    %291 = vmatpush1.msra.mxu0 0.0
    %292 = vmatprep.subr.mxu0 0.0
    %293 = vmatpush1.msra.mxu0 0.0
    %294 = vmatprep.subr.mxu0 0.0
    %295 = vmatpush1.msra.mxu0 %v116
    %296 = vmatprep.subr.mxu0 0.0
    %297 = vmatpush2.msra.mxu0 0.0
    %298 = vmatprep.subr.mxu0 0.0
    %299 = vmatpush2.msra.mxu0 0.0
    %300 = vmatprep.subr.mxu0 0.0
    %301 = vmatpush2.msra.mxu0 0.0
    %302 = vmatprep.subr.mxu0 0.0
    %303 = vmatpush2.msra.mxu0 0.0
    %304 = vmatprep.subr.mxu0 0.0
    %305 = vmatpush2.msra.mxu0 0.0
    %306 = vmatprep.subr.mxu0 0.0
    %307 = vmatpush2.msra.mxu0 0.0
    %308 = vmatprep.subr.mxu0 0.0
    %309 = vmatpush2.msra.mxu0 0.0
    %310 = vmatprep.subr.mxu0 0.0
    %311 = vmatpush2.msra.mxu0 0.0
    %312 = vmatprep.subr.mxu0 0.0
    %313 = vmatpush2.msra.mxu0 0.0
    %314 = vmatprep.subr.mxu0 0.0
    %315 = vmatpush2.msra.mxu0 0.0
    %316 = vmatprep.subr.mxu0 0.0
    %317 = vmatpush2.msra.mxu0 0.0
    %318 = vmatprep.subr.mxu0 0.0
    %319 = vmatpush2.msra.mxu0 0.0
    %320 = vmatprep.subr.mxu0 0.0
    %321 = vmatpush2.msra.mxu0 0.0
    %322 = vmatprep.subr.mxu0 0.0
    %323 = vmatpush2.msra.mxu0 0.0
    %324 = vmatprep.subr.mxu0 0.0
    %325 = vmatpush2.msra.mxu0 0.0
    %326 = vmatprep.subr.mxu0 0.0
    %327 = vmatpush2.msra.mxu0 0.0
    %328 = vmatprep.mubr.f32.mxu0 0.0
    %329 = vmatmul.mubr.f32.gmra.mxu0 %v262
    %v330 = vpop.f32.mrf.mxu0
    %v331 = vadd.f32 1e-05, %v330
    %v332 = vpop.f32.mrf.mxu0
    %333 = vdwg.mxu0
    %v334 = vrsqrt.pop %v331
    %v335 = vld [vmem:[%s1] sm:$0x1]
    %v336 = vld [vmem:[%s2] sm:$0x1]
    %v337 = vmul.f32 %v188, %v334
    %v339 = vlaneseq
    %v340 = vshrl.u32 %v339, 7
    %v341 = vsub.s32 0, %v340
    %v342 = vrot.slane %v335, %v341
    %v344 = vmul.f32 %v337, %v342
    %v346 = vlaneseq
    %v347 = vshrl.u32 %v346, 7
    %v348 = vsub.s32 0, %v347
    %v349 = vrot.slane %v336, %v348
    %v351 = vadd.f32 %v344, %v349
    %352 = vst [vmem:[#allocation2] sm:$0xf] %v351
    // Predicated region
    $region22: #{tpu_custom_call.1} parent=1 // pred_check
      _
    $region23: #{tpu_custom_call.1} parent=1 // pred_check_branch
      %354 = sbr.rel (0) target = $region25
    $region24: #{tpu_custom_call.1} parent=1 // pred_region
      %s356 = ssub.s32 64, 64
      %357 = vsyncadd [#allocation3], %s356
      %s359 = sshll.u32 [#allocation2], 4
      %s360 = int_to_ptr.vmem [resolvable:$true] %s359
      %362 = dma.vmem_to_hbm [thread:$0]  %s360, 64, %s5, [#allocation3]
    $region25: #{tpu_custom_call.1} parent=1 // pred_fallthru
      _
    // Predicated region
    $region26: #{tpu_custom_call.1} parent=1 // pred_check
      _
    $region27: #{tpu_custom_call.1} parent=1 // pred_check_branch
      %364 = sbr.rel (0) target = $region29
    $region28: #{tpu_custom_call.1} parent=1 // pred_region
      %365 = dma.done [#allocation3], 64
    $region29: #{tpu_custom_call.1} parent=1 // pred_fallthru
      _
    %366 = vsyncpa [#allocation3], 1

</llo_original>
